<compile_context>
chip_gen: v7x
topology: tpu7x:2x2x1
jax: 0.10.0
libtpu: 0.0.40
codegen_flags: <defaults>
</compile_context>

<pallas_src>
import functools

import jax
import jax.numpy as jnp
from jax.experimental import pallas as pl
from jax.experimental.pallas import tpu as pltpu


def _round_up(x, m):
    return ((x + m - 1) // m) * m


def _cdiv(a, b):
    return -(-a // b)


def _default_n_parallel():
    """2-way grid split only on chips exposing 2 TensorCores to one program
    (v7x); on single-TC v5e / v6e it is just a serial loop plus overhead."""
    try:
        kind = jax.devices()[0].device_kind.lower()
    except Exception:
        return 1
    return 2 if "v7" in kind else 1


def _vmem_budget_bytes():
    """Generation-aware VMEM budget used to size the row tile."""
    cap = None
    try:
        cap = getattr(pltpu.get_tpu_info(), "vmem_capacity_bytes", None)
    except Exception:
        cap = None
    if not cap:
        cap = 64 * 1024 * 1024          # assume the smallest (v7x) if unknown
    # Stay well under the default scoped limits (16 MiB v5e, 32 MiB v6e/v7x)
    # and under v7x's 64 MiB physical VMEM, counting the f32 intermediates.
    return min(cap // 4, 20 * 1024 * 1024)


# ----------------------------- elementwise math ------------------------------

def _apply_focal(loss, one_m_pt, alpha_t, gamma):
    g = float(gamma)
    if g == 2.0:                         # default: plain VPU square, no EUP pow
        loss = (one_m_pt * one_m_pt) * loss
    elif g == 1.0:
        loss = one_m_pt * loss
    elif g != 0.0:
        loss = jnp.power(one_m_pt, g) * loss
    if alpha_t is not None:
        loss = alpha_t * loss
    return loss


def _bce_terms(x, need_p):
    """Shared-softplus form of BCE-on-sigmoid.

    Returns (-max(log p, -100), -max(log(1-p), -100), p or None) with p only
    materialised when the focal modulation needs it.  log(1+z) with z in (0,1]
    is used instead of log1p for a guaranteed Mosaic lowering; the accuracy
    difference is negligible here.
    """
    z = jnp.exp(-jnp.abs(x))
    s = jnp.log(1.0 + z)
    nll_pos = jnp.minimum(s + jnp.maximum(-x, 0.0), 100.0)   # -max(log p, -100)
    nll_neg = jnp.minimum(s + jnp.maximum(x, 0.0), 100.0)    # -max(log(1-p), -100)
    p = None
    if need_p:
        p = jnp.where(x >= 0.0, 1.0, z) / (1.0 + z)          # sigmoid(x)
    return nll_pos, nll_neg, p


def _focal_bce_select(x, pos_mask, *, focal, alpha, gamma):
    """Hard {0,1} targets given as a boolean mask: selects, no one-hot math."""
    nll_pos, nll_neg, p = _bce_terms(x, need_p=focal)
    loss = jnp.where(pos_mask, nll_pos, nll_neg)
    if focal:
        one_m_pt = jnp.where(pos_mask, 1.0 - p, p)
        alpha_t = jnp.where(pos_mask, alpha, 1.0 - alpha) if alpha >= 0 else None
        loss = _apply_focal(loss, one_m_pt, alpha_t, gamma)
    return loss


def _focal_bce_dense(x, t, *, focal, alpha, gamma):
    """General (possibly soft) float targets."""
    nll_pos, nll_neg, p = _bce_terms(x, need_p=focal)
    loss = t * nll_pos + (1.0 - t) * nll_neg
    if focal:
        one_m_pt = 1.0 - (p * t + (1.0 - p) * (1.0 - t))
        alpha_t = (alpha * t + (1.0 - alpha) * (1.0 - t)) if alpha >= 0 else None
        loss = _apply_focal(loss, one_m_pt, alpha_t, gamma)
    return loss


# --------------------------------- kernels -----------------------------------

def _reduce_kernel(pred_ref, tgt_ref, out_ref, *, focal, alpha, gamma,
                   n_obj, n_cls, k_pack, tile_rows, n_tiles, labels_mode):
    """Grid (n_par, tiles_per_par).  out_ref is a resident (8, W) f32 block of
    genuine partial sums per parallel index (VPU-only accumulation)."""
    j = pl.program_id(1)

    @pl.when(j == 0)
    def _():
        out_ref[...] = jnp.zeros_like(out_ref)

    logical_tile = pl.program_id(0) * pl.num_programs(1) + j

    @pl.when(logical_tile < n_tiles)          # skip the clamped duplicate tile
    def _():
        x = pred_ref[...].astype(jnp.float32)
        w = x.shape[1]
        lane = jax.lax.broadcasted_iota(jnp.int32, (tile_rows, w), 1)

        if labels_mode:
            # One-hot rebuilt in-kernel as a boolean mask: a lane is positive
            # iff it equals the packed label position of one of the k objects
            # sharing the row (background / pad objects carry position -1).
            pos_mask = lane == tgt_ref[:, 0:1]
            for obj in range(1, k_pack):
                pos_mask = pos_mask | (lane == tgt_ref[:, obj:obj + 1])
            loss = _focal_bce_select(x, pos_mask, focal=focal, alpha=alpha,
                                     gamma=gamma)
        else:
            t = tgt_ref[...].astype(jnp.float32)
            loss = _focal_bce_dense(x, t, focal=focal, alpha=alpha, gamma=gamma)

        # Zero lanes belonging to objects >= n_obj (packing pad, partial last
        # tile, garbage rows of a partial edge block).
        row = logical_tile * tile_rows + jax.lax.broadcasted_iota(
            jnp.int32, (tile_rows, 1), 0)
        valid_lanes = jnp.clip(n_obj - row * k_pack, 0, k_pack) * n_cls
        loss = jnp.where(lane < valid_lanes, loss, 0.0)

        # VPU-only partial accumulation into the resident (8, W) block: sum
        # sublane groups of 8 rows (layout-trivial reshape + adds), no XLU
        # cross-lane reduce or scalar broadcast per grid step.
        out_ref[...] += jnp.sum(loss.reshape(tile_rows // 8, 8, w), axis=0)


def _none_kernel(pred_ref, tgt_ref, out_ref, *, focal, alpha, gamma,
                 tile_rows, labels_mode):
    """reduction='none': per-object mean loss, one (tile_rows, 1) block/tile."""
    x = pred_ref[...].astype(jnp.float32)
    n_cls = x.shape[1]
    if labels_mode:
        lane = jax.lax.broadcasted_iota(jnp.int32, (tile_rows, n_cls), 1)
        pos_mask = lane == tgt_ref[...]          # label == n_cls -> all-False row
        loss = _focal_bce_select(x, pos_mask, focal=focal, alpha=alpha,
                                 gamma=gamma)
    else:
        t = tgt_ref[...].astype(jnp.float32)
        loss = _focal_bce_dense(x, t, focal=focal, alpha=alpha, gamma=gamma)
    out_ref[...] = jnp.sum(loss, axis=1, keepdims=True) * (1.0 / n_cls)
    # TODO(synk): a lane-dense (1, tile_rows) output layout would avoid masked
    # partial stores, but its second-minor block dim of 1 is not 8-aligned for
    # multi-tile outputs; the column layout is kept for lowering robustness
    # (output bytes are tiny vs the streamed logits).


# --------------------------------- wrapper ------------------------------------

def classification_loss(pred, target, *, focal=False, alpha=0.25, gamma=2.0,
                        reduction="mean", tile_rows=None, n_parallel=None):
    """JAX/Pallas equivalent of ClassificationLoss.forward.

    pred:   [N_obj, N_cls] float logits (f32 or bf16; bf16 halves HBM reads)
    target: [N_obj] integer labels (label == N_cls -> background / all-zero row)
            or [N_obj, N_cls] float one-hot / soft targets.
    """
    assert reduction in ("mean", "sum", "none")
    n_obj, n_cls = pred.shape

    labels_mode = target.ndim == 1
    if labels_mode:
        assert jnp.issubdtype(target.dtype, jnp.integer), \
            "Label-encoded target must be an integer dtype"
        labels = target.astype(jnp.int32)
    else:
        assert target.ndim == 2 and target.shape == (n_obj, n_cls)

    budget = _vmem_budget_bytes()

    # ---------------- reduction == 'none' : per-object mean loss -------------
    if reduction == "none":
        if labels_mode:
            tgt_arr = labels.reshape(n_obj, 1)
            tgt_row_bytes, tgt_blk_w = 4, 1
        else:
            tgt_arr = target
            tgt_row_bytes, tgt_blk_w = n_cls * target.dtype.itemsize, n_cls

        stream_row = n_cls * pred.dtype.itemsize + tgt_row_bytes
        compute_row = n_cls * 4                   # all math is f32 in-kernel
        row_cost = 2 * stream_row + 8 * compute_row
        if tile_rows is None:
            tile_rows = max(8, min(budget // max(row_cost, 1), 1024))
        tile_rows = max(8, tile_rows - tile_rows % 8)
        tile_rows = min(tile_rows, _round_up(n_obj, 8))
        n_tiles = _cdiv(n_obj, tile_rows)
        vmem_limit = int(min(max(2 * tile_rows * row_cost, 16 << 20), 40 << 20))

        kernel = functools.partial(_none_kernel, focal=focal, alpha=alpha,
                                   gamma=gamma, tile_rows=tile_rows,
                                   labels_mode=labels_mode)
        out = pl.pallas_call(
            kernel,
            out_shape=jax.ShapeDtypeStruct((n_tiles * tile_rows, 1), jnp.float32),
            grid_spec=pltpu.PrefetchScalarGridSpec(
                num_scalar_prefetch=0, grid=(n_tiles,),
                in_specs=[pl.BlockSpec((tile_rows, n_cls), lambda i: (i, 0)),
                          pl.BlockSpec((tile_rows, tgt_blk_w), lambda i: (i, 0))],
                out_specs=pl.BlockSpec((tile_rows, 1), lambda i: (i, 0)),
            ),
            compiler_params=pltpu.CompilerParams(
                dimension_semantics=("parallel",),
                vmem_limit_bytes=vmem_limit),
        )(pred, tgt_arr)
        return out[:n_obj, 0]

    # ---------------- reduction in ('mean', 'sum') ---------------------------
    # Lane packing: k = 128 // n_cls objects share one 128-lane row so the
    # VPU / EUP stop doing redundant work on padded lanes.  k is capped to
    # bound the unrolled in-kernel mask-compare loop.
    k_pack = max(1, min(128 // n_cls, 16))
    n_pad = _round_up(n_obj, k_pack)
    w = k_pack * n_cls
    n_rows = n_pad // k_pack

    pred_p = pred
    if n_pad != n_obj:
        # TODO(synk): the pad forces one extra HBM copy of pred; a ragged-tail
        # kernel would avoid it, but the pad only triggers when k_pack ∤ N_obj.
        pred_p = jnp.pad(pred_p, ((0, n_pad - n_obj), (0, 0)))
    if k_pack > 1:
        pred_p = pred_p.reshape(n_rows, w)        # free bitcast reshape

    if labels_mode:
        lbl = labels
        if n_pad != n_obj:
            lbl = jnp.concatenate(
                [lbl, jnp.full((n_pad - n_obj,), n_cls, jnp.int32)])
        # Packed lane position of the positive class; background / pad -> -1
        # (never matches a lane => all-zero one-hot row).
        pos = jnp.where(
            lbl < n_cls,
            lbl + (jnp.arange(n_pad, dtype=jnp.int32) % k_pack) * n_cls,
            -1).astype(jnp.int32)
        tgt_p = pos.reshape(n_rows, k_pack)
        tgt_blk_w = k_pack
        tgt_row_bytes = 4 * k_pack
    else:
        tgt_p = target
        if n_pad != n_obj:
            tgt_p = jnp.pad(tgt_p, ((0, n_pad - n_obj), (0, 0)))
        if k_pack > 1:
            tgt_p = tgt_p.reshape(n_rows, w)
        tgt_blk_w = w
        tgt_row_bytes = w * target.dtype.itemsize

    stream_row = w * pred.dtype.itemsize + tgt_row_bytes
    compute_row = w * 4                           # f32 working set in-kernel
    row_cost = 2 * stream_row + 8 * compute_row
    if tile_rows is None:
        tile_rows = max(8, min(budget // max(row_cost, 1), 1024))
    tile_rows = max(8, tile_rows - tile_rows % 8)
    tile_rows = min(tile_rows, _round_up(n_rows, 8))
    n_tiles = _cdiv(n_rows, tile_rows)
    vmem_limit = int(min(max(2 * tile_rows * row_cost, 16 << 20), 40 << 20))

    if n_parallel is None:
        n_parallel = _default_n_parallel()
    n_par = max(1, min(n_parallel, n_tiles))
    tiles_per_par = _cdiv(n_tiles, n_par)

    def row_block(p, j):
        # Clamp so the possible extra logical tile of the parallel split never
        # DMAs out of bounds; its compute is skipped in-kernel via pl.when.
        return (jnp.minimum(p * tiles_per_par + j, n_tiles - 1), 0)

    kernel = functools.partial(
        _reduce_kernel, focal=focal, alpha=alpha, gamma=gamma, n_obj=n_obj,
        n_cls=n_cls, k_pack=k_pack, tile_rows=tile_rows, n_tiles=n_tiles,
        labels_mode=labels_mode)

    out = pl.pallas_call(
        kernel,
        out_shape=jax.ShapeDtypeStruct((n_par * 8, w), jnp.float32),
        grid_spec=pltpu.PrefetchScalarGridSpec(
            num_scalar_prefetch=0, grid=(n_par, tiles_per_par),
            in_specs=[pl.BlockSpec((tile_rows, w), row_block),
                      pl.BlockSpec((tile_rows, tgt_blk_w), row_block)],
            # One resident (8, W) partial-sum block per parallel index.
            out_specs=pl.BlockSpec((8, w), lambda p, j: (p, 0)),
        ),
        compiler_params=pltpu.CompilerParams(
            dimension_semantics=("parallel", "arbitrary"),
            vmem_limit_bytes=vmem_limit),
    )(pred_p, tgt_p)

    total = jnp.sum(out)                          # tiny (n_par*8, W) block
    if reduction == "mean":
        return total / jnp.float32(n_obj * n_cls)
    return total / jnp.float32(n_cls)             # "sum" of per-row means


# -------------------------------- reference -----------------------------------

def _reference(pred, target, *, focal, alpha, gamma, reduction):
    """Pure-JAX reference mirroring the PyTorch module."""
    n_cls = pred.shape[-1]
    if target.ndim == 1:
        t = (target[:, None] == jnp.arange(n_cls)[None, :]).astype(jnp.float32)
    else:
        t = target.astype(jnp.float32)
    p = jax.nn.sigmoid(pred.astype(jnp.float32))
    loss = -(t * jnp.maximum(jnp.log(p), -100.0)
             + (1 - t) * jnp.maximum(jnp.log(1 - p), -100.0))
    if focal:
        p_t = p * t + (1 - p) * (1 - t)
        loss = (1 - p_t) ** gamma * loss
        if alpha >= 0:
            alpha_t = alpha * t + (1 - alpha) * (1 - t)
            loss = alpha_t * loss
    loss = loss.mean(1)
    if reduction == "mean":
        return loss.mean()
    if reduction == "sum":
        return loss.sum()
    return loss


if __name__ == "__main__":
    key = jax.random.PRNGKey(0)
    k_pred, k_tgt, k_pred2, k_tgt2, k_pred3, k_tgt3 = jax.random.split(key, 6)

    def check(out, ref):
        out = jax.block_until_ready(out)
        return bool(jnp.allclose(out, ref, atol=1e-5, rtol=1e-5))

    ok = True

    # --- Core matrix: n_cls=32 (lane-packed x4), n_obj=20 --------------------
    n_obj, n_cls = 20, 32
    pred = jax.random.normal(k_pred, (n_obj, n_cls), dtype=jnp.float32)
    labels = jax.random.randint(k_tgt, (n_obj,), 0, n_cls + 1, dtype=jnp.int32)
    onehot = (labels[:, None] == jnp.arange(n_cls)[None, :]).astype(jnp.float32)

    for focal in (False, True):
        for reduction in ("mean", "sum", "none"):
            for tgt in (labels, onehot):
                out = classification_loss(pred, tgt, focal=focal, alpha=0.25,
                                          gamma=2.0, reduction=reduction)
                ref = _reference(pred, tgt, focal=focal, alpha=0.25,
                                 gamma=2.0, reduction=reduction)
                ok &= check(out, ref)

    # --- Multi-tile / parallel split / ragged packing pad: n_obj=270 ---------
    n_obj2, n_cls2 = 270, 32          # 270 % 4 != 0 -> packing pad path
    pred2 = jax.random.normal(k_pred2, (n_obj2, n_cls2), dtype=jnp.float32)
    labels2 = jax.random.randint(k_tgt2, (n_obj2,), 0, n_cls2 + 1,
                                 dtype=jnp.int32)
    for reduction in ("mean", "sum", "none"):
        out = classification_loss(pred2, labels2, focal=True, alpha=0.25,
                                  gamma=2.0, reduction=reduction,
                                  tile_rows=8, n_parallel=2)
        ref = _reference(pred2, labels2, focal=True, alpha=0.25, gamma=2.0,
                         reduction=reduction)
        ok &= check(out, ref)

    # --- Wide classes (no packing, physically padded lanes): n_cls=200 -------
    n_obj3, n_cls3 = 37, 200
    pred3 = jax.random.normal(k_pred3, (n_obj3, n_cls3), dtype=jnp.float32)
    labels3 = jax.random.randint(k_tgt3, (n_obj3,), 0, n_cls3 + 1,
                                 dtype=jnp.int32)
    for reduction in ("mean", "none"):
        out = classification_loss(pred3, labels3, focal=True, alpha=0.25,
                                  gamma=2.0, reduction=reduction)
        ref = _reference(pred3, labels3, focal=True, alpha=0.25, gamma=2.0,
                         reduction=reduction)
        ok &= check(out, ref)

    # --- bf16 logits streamed from HBM, upcast in-kernel ---------------------
    out = classification_loss(pred.astype(jnp.bfloat16), labels, focal=True,
                              alpha=0.25, gamma=2.0, reduction="mean")
    ref = _reference(pred.astype(jnp.bfloat16), labels, focal=True, alpha=0.25,
                     gamma=2.0, reduction="mean")
    ok &= check(out, ref)

    print("KERNEL_OK" if ok else "KERNEL_MISMATCH")
</pallas_src>

<mosaic_0001>
module attributes {stable_mosaic.version = 11 : i64} {
  func.func @_reduce_kernel(%arg0: i32, %arg1: i32, %arg2: memref<8x128xf32, #tpu.memory_space<vmem>>, %arg3: memref<8x4xi32, #tpu.memory_space<vmem>>, %arg4: memref<8x128xf32, #tpu.memory_space<vmem>>) attributes {dimension_semantics = [#tpu.dimension_semantics<parallel>, #tpu.dimension_semantics<arbitrary>], iteration_bounds = array<i64: 1, 1>, scalar_prefetch = 0 : i64, scratch_operands = 0 : i64, tpu.core_type = #tpu.core_type<tc>, window_params = [{transform_indices = @transform_0, window_bounds = array<i64: 8, 128>}, {transform_indices = @transform_1, window_bounds = array<i64: 8, 4>}, {transform_indices = @transform_2, window_bounds = array<i64: 8, 128>}]} {
    %c0_i32 = arith.constant 0 : i32
    %0 = arith.cmpi eq, %arg1, %c0_i32 : i32
    %1 = arith.extui %0 : i1 to i32
    %c0_i32_0 = arith.constant 0 : i32
    %2 = arith.cmpi ne, %1, %c0_i32_0 : i32
    scf.if %2 {
      %cst = arith.constant 0.000000e+00 : f32
      %8 = vector.broadcast %cst : f32 to vector<8x128xf32>
      %c0 = arith.constant 0 : index
      %c0_3 = arith.constant 0 : index
      %9 = vector.load %arg4[%c0, %c0_3] : memref<8x128xf32, #tpu.memory_space<vmem>>, vector<8x128xf32>
      tpu.vector_store %arg4[%c0, %c0_3], %8 {strides = array<i32>} : memref<8x128xf32, #tpu.memory_space<vmem>>, vector<8x128xf32>,
    } else {
    }
    %c1_i32 = arith.constant 1 : i32
    %3 = arith.muli %arg0, %c1_i32 : i32
    %4 = arith.addi %3, %arg1 : i32
    %c1_i32_1 = arith.constant 1 : i32
    %5 = arith.cmpi slt, %4, %c1_i32_1 : i32
    %6 = arith.extui %5 : i1 to i32
    %c0_i32_2 = arith.constant 0 : i32
    %7 = arith.cmpi ne, %6, %c0_i32_2 : i32
    scf.if %7 {
      %c0 = arith.constant 0 : index
      %c0_3 = arith.constant 0 : index
      %8 = vector.load %arg2[%c0, %c0_3] : memref<8x128xf32, #tpu.memory_space<vmem>>, vector<8x128xf32>
      %9 = tpu.iota {dimensions = array<i32: 1>} : vector<8x128xi32>
      %c0_4 = arith.constant 0 : index
      %c0_5 = arith.constant 0 : index
      %10 = vector.load %arg3[%c0_4, %c0_5] : memref<8x4xi32, #tpu.memory_space<vmem>>, vector<8x1xi32>
      %11 = vector.broadcast %10 : vector<8x1xi32> to vector<8x128xi32>
      %12 = arith.cmpi eq, %9, %11 : vector<8x128xi32>
      %c0_6 = arith.constant 0 : index
      %c1 = arith.constant 1 : index
      %13 = vector.load %arg3[%c0_6, %c1] : memref<8x4xi32, #tpu.memory_space<vmem>>, vector<8x1xi32>
      %14 = vector.broadcast %13 : vector<8x1xi32> to vector<8x128xi32>
      %15 = arith.cmpi eq, %9, %14 : vector<8x128xi32>
      %16 = arith.ori %12, %15 : vector<8x128xi1>
      %c0_7 = arith.constant 0 : index
      %c2 = arith.constant 2 : index
      %17 = vector.load %arg3[%c0_7, %c2] : memref<8x4xi32, #tpu.memory_space<vmem>>, vector<8x1xi32>
      %18 = vector.broadcast %17 : vector<8x1xi32> to vector<8x128xi32>
      %19 = arith.cmpi eq, %9, %18 : vector<8x128xi32>
      %20 = arith.ori %16, %19 : vector<8x128xi1>
      %c0_8 = arith.constant 0 : index
      %c3 = arith.constant 3 : index
      %21 = vector.load %arg3[%c0_8, %c3] : memref<8x4xi32, #tpu.memory_space<vmem>>, vector<8x1xi32>
      %22 = vector.broadcast %21 : vector<8x1xi32> to vector<8x128xi32>
      %23 = arith.cmpi eq, %9, %22 : vector<8x128xi32>
      %24 = arith.ori %20, %23 : vector<8x128xi1>
      %25 = math.absf %8 : vector<8x128xf32>
      %cst = arith.constant 0.000000e+00 : f32
      %26 = vector.broadcast %cst : f32 to vector<8x128xf32>
      %27 = arith.subf %26, %25 : vector<8x128xf32>
      %28 = math.exp %27 : vector<8x128xf32>
      %cst_9 = arith.constant 1.000000e+00 : f32
      %29 = vector.broadcast %cst_9 : f32 to vector<8x128xf32>
      %30 = arith.addf %29, %28 : vector<8x128xf32>
      %31 = math.log %30 : vector<8x128xf32>
      %cst_10 = arith.constant 0.000000e+00 : f32
      %32 = vector.broadcast %cst_10 : f32 to vector<8x128xf32>
      %33 = arith.subf %32, %8 : vector<8x128xf32>
      %cst_11 = arith.constant 0.000000e+00 : f32
      %34 = vector.broadcast %cst_11 : f32 to vector<8x128xf32>
      %35 = arith.maximumf %33, %34 : vector<8x128xf32>
      %36 = arith.addf %31, %35 : vector<8x128xf32>
      %cst_12 = arith.constant 1.000000e+02 : f32
      %37 = vector.broadcast %cst_12 : f32 to vector<8x128xf32>
      %38 = arith.minimumf %36, %37 : vector<8x128xf32>
      %cst_13 = arith.constant 0.000000e+00 : f32
      %39 = vector.broadcast %cst_13 : f32 to vector<8x128xf32>
      %40 = arith.maximumf %8, %39 : vector<8x128xf32>
      %41 = arith.addf %31, %40 : vector<8x128xf32>
      %cst_14 = arith.constant 1.000000e+02 : f32
      %42 = vector.broadcast %cst_14 : f32 to vector<8x128xf32>
      %43 = arith.minimumf %41, %42 : vector<8x128xf32>
      %44 = arith.select %24, %38, %43 : vector<8x128xi1>, vector<8x128xf32>
      %c8_i32 = arith.constant 8 : i32
      %45 = arith.muli %4, %c8_i32 : i32
      %46 = tpu.iota {dimensions = array<i32: 0>} : vector<8x1xi32>
      %47 = vector.broadcast %45 : i32 to vector<8x1xi32>
      %48 = arith.addi %47, %46 : vector<8x1xi32>
      %c4_i32 = arith.constant 4 : i32
      %49 = vector.broadcast %c4_i32 : i32 to vector<8x1xi32>
      %50 = arith.muli %48, %49 : vector<8x1xi32>
      %c20_i32 = arith.constant 20 : i32
      %51 = vector.broadcast %c20_i32 : i32 to vector<8x1xi32>
      %52 = arith.subi %51, %50 : vector<8x1xi32>
      %c0_i32_15 = arith.constant 0 : i32
      %c4_i32_16 = arith.constant 4 : i32
      %53 = vector.broadcast %c0_i32_15 : i32 to vector<8x1xi32>
      %54 = arith.maxsi %53, %52 : vector<8x1xi32>
      %55 = vector.broadcast %c4_i32_16 : i32 to vector<8x1xi32>
      %56 = arith.minsi %55, %54 : vector<8x1xi32>
      %c32_i32 = arith.constant 32 : i32
      %57 = vector.broadcast %c32_i32 : i32 to vector<8x1xi32>
      %58 = arith.muli %56, %57 : vector<8x1xi32>
      %59 = vector.broadcast %58 : vector<8x1xi32> to vector<8x128xi32>
      %60 = arith.cmpi slt, %9, %59 : vector<8x128xi32>
      %cst_17 = arith.constant 0.000000e+00 : f32
      %61 = vector.broadcast %cst_17 : f32 to vector<8x128xf32>
      %62 = arith.select %60, %44, %61 : vector<8x128xi1>, vector<8x128xf32>
      %c0_18 = arith.constant 0 : index
      %c0_19 = arith.constant 0 : index
      %63 = vector.load %arg4[%c0_18, %c0_19] : memref<8x128xf32, #tpu.memory_space<vmem>>, vector<8x128xf32>
      %64 = vector.shape_cast %62 : vector<8x128xf32> to vector<1x8x128xf32>
      %cst_20 = arith.constant dense<0.000000e+00> : vector<8x128xf32>
      %65 = vector.multi_reduction <add>, %64, %cst_20 [0] : vector<1x8x128xf32> to vector<8x128xf32>
      %66 = arith.addf %63, %65 : vector<8x128xf32>
      %c0_21 = arith.constant 0 : index
      %c0_22 = arith.constant 0 : index
      %67 = vector.load %arg4[%c0_21, %c0_22] : memref<8x128xf32, #tpu.memory_space<vmem>>, vector<8x128xf32>
      tpu.vector_store %arg4[%c0_21, %c0_22], %66 {strides = array<i32>} : memref<8x128xf32, #tpu.memory_space<vmem>>, vector<8x128xf32>,
    } else {
    }
    return
  }
  func.func @transform_0(%arg0: i32, %arg1: i32) -> (i32, i32) {
    %c1_i32 = arith.constant 1 : i32
    %0 = arith.muli %arg0, %c1_i32 : i32
    %1 = arith.addi %0, %arg1 : i32
    %c0_i32 = arith.constant 0 : i32
    %2 = arith.minsi %1, %c0_i32 : i32
    %c0_i32_0 = arith.constant 0 : i32
    %c0_i32_1 = arith.constant 0 : i32
    return %2, %c0_i32_0 : i32, i32
  }
  func.func @transform_1(%arg0: i32, %arg1: i32) -> (i32, i32) {
    %c1_i32 = arith.constant 1 : i32
    %0 = arith.muli %arg0, %c1_i32 : i32
    %1 = arith.addi %0, %arg1 : i32
    %c0_i32 = arith.constant 0 : i32
    %2 = arith.minsi %1, %c0_i32 : i32
    %c0_i32_0 = arith.constant 0 : i32
    %c0_i32_1 = arith.constant 0 : i32
    return %2, %c0_i32_0 : i32, i32
  }
  func.func @transform_2(%arg0: i32, %arg1: i32) -> (i32, i32) {
    %c0_i32 = arith.constant 0 : i32
    %c0_i32_0 = arith.constant 0 : i32
    return %arg0, %c0_i32 : i32, i32
  }
}

</mosaic_0001>

<llo_original>
// kernel: tpu_custom_call.1
$region0: #{tpu_custom_call.1}
  #allocation0 [shape = 'u32[]', space=smem, size = 0x4, offset = 0x4, fixed_abs, tag = 'smem constant byte address 0x4 - core index']
  #allocation1 [shape = 'u32[144,128]{1,0:T(1,128)}', space=vmem, size = 0x12000, scoped, tag = 'internal scratch']
  %s0 = inlined_call_operand.vmem [shape: f32[5,128], index: 0, kind: input, shape index: {}]
  %s1 = inlined_call_operand.vmem [shape: s32[5,4], index: 1, kind: input, shape index: {}]
  %s2 = inlined_call_operand.hbm [shape: f32[8,128], index: 2, kind: output, shape index: {}]
  %s3 = sld [smem:[#allocation0]]
  $region26: #{tpu_custom_call.1} parent=0
    _
  %s5 = ssub.s32 1, %s3
  %s6 = scalar_select 0, %s5, %s3
  $region1: #{tpu_custom_call.1} parent=0
    #allocation2 [shape = 'u8[4096]{0}', space=vmem, size = 0x1000, scoped, tag = 'output window, operand 0, single buffered']
    #allocation3 [shape = 's32[1]{0}', space=sflag, size = 0x4, scoped, tag = 'scoped memory for tpu_custom_call.1']
    %7 = vsyncpa [#allocation3], 0
    // Predicated region
    $region2: #{tpu_custom_call.1} parent=1 // pred_check
      _
    $region3: #{tpu_custom_call.1} parent=1 // pred_check_branch
      %9 = sbr.rel (0) target = $region5
    $region4: #{tpu_custom_call.1} parent=1 // pred_region
      %s10 = sadd.s32 0, 0
      %p11 = scmp.lt.s32.totalorder %s10, 0
      %s12 = scalar_select %p11, %s10, 0
      %p13 = scmp.lt.s32.totalorder %s12, 0
      %s14 = scalar_select %p13, %s12, 0
      %s15 = smul.addr %s14, 8
      %s16 = scalar_lea.vmem %s0, %s15
      %s17 = sadd.s32 0, 0
      %p18 = scmp.lt.s32.totalorder %s17, 0
      %s19 = scalar_select %p18, %s17, 0
    $region5: #{tpu_custom_call.1} parent=1 // pred_fallthru
      _
    // Predicated region
    $region6: #{tpu_custom_call.1} parent=1 // pred_check
      _
    $region7: #{tpu_custom_call.1} parent=1 // pred_check_branch
      %21 = sbr.rel (0) target = $region9
    $region8: #{tpu_custom_call.1} parent=1 // pred_region
      %s22 = sadd.s32 0, 0
      %p23 = scmp.lt.s32.totalorder %s22, 0
      %s24 = scalar_select %p23, %s22, 0
      %p25 = scmp.lt.s32.totalorder %s24, 0
      %s26 = scalar_select %p25, %s24, 0
      %s27 = smul.addr %s26, 8
      %s28 = scalar_lea.vmem %s1, %s27
      %s29 = sadd.s32 0, 0
      %p30 = scmp.lt.s32.totalorder %s29, 0
      %s31 = scalar_select %p30, %s29, 0
    $region9: #{tpu_custom_call.1} parent=1 // pred_fallthru
      _
    %s32 = sadd.s32 0, 0
    %p33 = scmp.lt.s32.totalorder %s32, 0
    %s34 = scalar_select %p33, %s32, 0
    %p35 = scmp.lt.s32.totalorder %s34, 0
    %s36 = scalar_select %p35, %s34, 0
    %s37 = smul.addr %s36, 8
    %s38 = scalar_lea.vmem %s0, %s37
    %s39 = sadd.s32 0, 0
    %p40 = scmp.lt.s32.totalorder %s39, 0
    %s41 = scalar_select %p40, %s39, 0
    %p42 = scmp.lt.s32.totalorder %s41, 0
    %s43 = scalar_select %p42, %s41, 0
    %s44 = smul.addr %s43, 8
    %s45 = scalar_lea.vmem %s1, %s44
    %s46 = sadd.s32 0, 0
    %p47 = scmp.lt.s32.totalorder %s46, 0
    %s48 = scalar_select %p47, %s46, 0
    %p49 = scmp.lt.s32.totalorder %s48, 0
    %s50 = scalar_select %p49, %s48, 0
    %s51 = smul.addr %s50, 8
    %s52 = scalar_lea.vmem %s0, %s51
    %s53 = sadd.s32 0, 0
    %p54 = scmp.lt.s32.totalorder %s53, 0
    %s55 = scalar_select %p54, %s53, 0
    %s56 = sadd.s32 0, 0
    %p57 = scmp.lt.s32.totalorder %s56, 0
    %s58 = scalar_select %p57, %s56, 0
    %p59 = scmp.lt.s32.totalorder %s58, 0
    %s60 = scalar_select %p59, %s58, 0
    %s61 = smul.addr %s60, 8
    %s62 = scalar_lea.vmem %s1, %s61
    %s63 = sadd.s32 0, 0
    %p64 = scmp.lt.s32.totalorder %s63, 0
    %s65 = scalar_select %p64, %s63, 0
    %p66 = scmp.eq.s32.totalorder 0, 0
    // Predicated region
    $region10: #{tpu_custom_call.1} parent=1 // pred_check
      %p67 = pneg %p66
    $region11: #{tpu_custom_call.1} parent=1 // pred_check_branch
      %69 = sbr.rel (%p67) target = $region13
    $region12: #{tpu_custom_call.1} parent=1 // pred_region
      %70 = vst [vmem:[#allocation2] sm:$0xff] 0.0
    $region13: #{tpu_custom_call.1} parent=1 // pred_fallthru
      _
    %s71 = sadd.s32 0, 0
    %p72 = scmp.lt.s32.totalorder %s71, 1
    // Predicated region
    $region14: #{tpu_custom_call.1} parent=1 // pred_check
      %p73 = pneg %p72
    $region15: #{tpu_custom_call.1} parent=1 // pred_check_branch
      %75 = sbr.rel (%p73) target = $region17
    $region16: #{tpu_custom_call.1} parent=1 // pred_region
      %v76 = vld [vmem:[%s52] sm:$0xff]
      %v77 = vlaneseq
      %v78 = vand.u32 %v77, 127
      %v79 = vld [vmem:[%s62] sm:$0xff]
      %80 = vset.pattern.permute.xlu0 0
      %81 = vperm.xlu0 %80, %v79
      %v82 = vpop.permute.xlu0 %81
      %vm83 = vcmp.eq.s32.totalorder %v78, %v82
      %84 = vset.pattern.permute.xlu0 1
      %85 = vperm.xlu0 %84, %v79
      %v86 = vpop.permute.xlu0 %85
      %vm87 = vcmp.eq.s32.totalorder %v78, %v86
      %vm88 = vmor %vm83, %vm87
      %89 = vset.pattern.permute.xlu0 2
      %90 = vperm.xlu0 %89, %v79
      %v91 = vpop.permute.xlu0 %90
      %vm92 = vcmp.eq.s32.totalorder %v78, %v91
      %vm93 = vmor %vm88, %vm92
      %94 = vset.pattern.permute.xlu0 3
      %95 = vperm.xlu0 %94, %v79
      %v96 = vpop.permute.xlu0 %95
      %vm97 = vcmp.eq.s32.totalorder %v78, %v96
      %vm98 = vmor %vm93, %vm97
      %v99 = vand.u32 2147483647, %v76
      %v100 = vsub.f32 0.0, %v99
      %v101 = vmul.f32 %v100, 1.442695
      %v102 = vpow.pop %v101
      %v103 = vadd.f32 %v102, 1.0
      %v104 = vlog2.pop %v103
      %v105 = vmul.f32 %v104, 0.6931472
      %v106 = vsub.f32 0.0, %v76
      %v107 = vmax.f32 %v106, 0.0
      %v108 = vadd.f32 %v105, %v107
      %v109 = vmin.f32 %v108, 100.0
      %v110 = vmax.f32 %v76, 0.0
      %v111 = vadd.f32 %v105, %v110
      %v112 = vmin.f32 %v111, 100.0
      %v113 = vsel %vm98, %v109, %v112
      %s114 = smul.u32 %s71, 8
      %v115 = vlaneseq
      %v116 = vshrl.u32 %v115, 7
      %v117 = vstv %s114
      %v118 = vadd.s32 %v117, %v116
      %v119 = vmul.u32 %v118, 4
      %v120 = vsub.s32 20, %v119
      %vm121 = vcmp.gt.s32.totalorder %v120, 0
      %v122 = vsel %vm121, %v120, 0
      %vm123 = vcmp.lt.s32.totalorder %v122, 4
      %v124 = vsel %vm123, %v122, 4
      %v125 = vmul.u32 %v124, 32
      %vm126 = vcmp.lt.s32.totalorder %v78, %v125
      %v127 = vsel %vm126, %v113, 0.0
      %v128 = vld [vmem:[#allocation2] sm:$0xff]
      %v129 = vadd.f32 %v127, 0.0
      %v130 = vadd.f32 %v128, %v129
      %131 = vst [vmem:[#allocation2] sm:$0xff] %v130
    $region17: #{tpu_custom_call.1} parent=1 // pred_fallthru
      _
    // Predicated region
    $region18: #{tpu_custom_call.1} parent=1 // pred_check
      _
    $region19: #{tpu_custom_call.1} parent=1 // pred_check_branch
      %133 = sbr.rel (0) target = $region21
    $region20: #{tpu_custom_call.1} parent=1 // pred_region
      %s135 = ssub.s32 128, 128
      %136 = vsyncadd [#allocation3], %s135
      %s138 = sshll.u32 [#allocation2], 4
      %s139 = int_to_ptr.vmem [resolvable:$true] %s138
      %141 = dma.vmem_to_hbm [thread:$0]  %s139, 128, %s2, [#allocation3]
    $region21: #{tpu_custom_call.1} parent=1 // pred_fallthru
      _
    // Predicated region
    $region22: #{tpu_custom_call.1} parent=1 // pred_check
      _
    $region23: #{tpu_custom_call.1} parent=1 // pred_check_branch
      %143 = sbr.rel (0) target = $region25
    $region24: #{tpu_custom_call.1} parent=1 // pred_region
      %144 = dma.done [#allocation3], 128
    $region25: #{tpu_custom_call.1} parent=1 // pred_fallthru
      _
    %145 = vsyncpa [#allocation3], 1

</llo_original>
